<compile_context>
chip_gen: v7x
topology: tpu7x:2x2x1
jax: 0.10.0
libtpu: 0.0.40
codegen_flags: <defaults>
</compile_context>

<pallas_src>
import functools

import jax
import jax.numpy as jnp
from jax.experimental import pallas as pl
from jax.experimental.pallas import tpu as pltpu

EPS = 1e-5
NEG = -1e30        # masks padded logit columns out of the log-softmax
LANE = 128         # lane width: pad every feature axis up to a multiple of this


def _pad_up(n):
    return ((n + LANE - 1) // LANE) * LANE


def mlp_two_hidden_kernel(x_ref, w1_ref, w2_ref, w3_ref, vec_ref, o_ref,
                          *, h1p, h2p, op):
    """Fused fc1->bn1->relu->fc2->bn2->relu->fc3->log_softmax.

    vec_ref rows: 0 = gamma1, 1 = beta1, 2 = gamma2, 3 = beta2,
                  4 = b3 (padded class columns filled with NEG).
    """
    vecs = vec_ref[...]

    def bn_relu(h, g, be):
        # Single-pass training-mode BN (biased variance), all in f32.
        mu = jnp.mean(h, axis=0, keepdims=True)
        msq = jnp.mean(h * h, axis=0, keepdims=True)
        var = jnp.maximum(msq - mu * mu, 0.0)
        h = (h - mu) * jax.lax.rsqrt(var + EPS) * g + be
        return jnp.maximum(h, 0.0)

    # ---- fc1 (bias dropped: cancelled by BN) ----
    x = x_ref[...].astype(jnp.bfloat16)
    h = jnp.dot(x, w1_ref[...], preferred_element_type=jnp.float32)
    h = bn_relu(h, vecs[0:1, :h1p], vecs[1:2, :h1p])

    # ---- fc2 (bias dropped: cancelled by BN) ----
    h = jnp.dot(h.astype(jnp.bfloat16), w2_ref[...],
                preferred_element_type=jnp.float32)
    h = bn_relu(h, vecs[2:3, :h2p], vecs[3:4, :h2p])

    # ---- fc3 + log_softmax over the lane-dense (padded) class axis ----
    y = jnp.dot(h.astype(jnp.bfloat16), w3_ref[...],
                preferred_element_type=jnp.float32)
    y = y + vecs[4:5, :op]                      # padded columns become ~ -1e30
    m = jnp.max(y, axis=1, keepdims=True)
    z = y - m
    lse = jnp.log(jnp.sum(jnp.exp(z), axis=1, keepdims=True))
    o_ref[...] = (z - lse).astype(o_ref.dtype)


def mlp_two_hidden_forward(x, dev_params, output_size):
    B = x.shape[0]
    h1p = dev_params["w1"].shape[1]
    h2p = dev_params["w2"].shape[1]
    op = dev_params["w3"].shape[1]

    kernel = functools.partial(mlp_two_hidden_kernel, h1p=h1p, h2p=h2p, op=op)
    vmem = pl.BlockSpec(memory_space=pltpu.MemorySpace.VMEM)

    out = pl.pallas_call(
        kernel,
        out_shape=jax.ShapeDtypeStruct((B, op), jnp.float32),
        in_specs=[vmem] * 5,
        out_specs=vmem,
        compiler_params=pltpu.CompilerParams(vmem_limit_bytes=32 * 1024 * 1024),
    )(x, dev_params["w1"], dev_params["w2"], dev_params["w3"],
      dev_params["vecs"])
    # Lane-dense kernel output; slice back to the real class count.
    return out[:, :output_size]


def init_params(key, input_size, h1, h2, output_size):
    """PyTorch-default-like init: Linear uniform +-1/sqrt(fan_in),
    BatchNorm1d gamma=1 / beta=0. Weights stored as (in, out) = weight.T."""
    def linear(key, fan_in, fan_out):
        kw, kb = jax.random.split(key)
        bound = 1.0 / jnp.sqrt(fan_in)
        w = jax.random.uniform(kw, (fan_in, fan_out), jnp.float32, -bound, bound)
        b = jax.random.uniform(kb, (1, fan_out), jnp.float32, -bound, bound)
        return w, b

    k1, k2, k3 = jax.random.split(key, 3)
    w1, b1 = linear(k1, input_size, h1)
    w2, b2 = linear(k2, h1, h2)
    w3, b3 = linear(k3, h2, output_size)
    return {
        "w1": w1, "b1": b1,
        "g1": jnp.ones((1, h1), jnp.float32), "be1": jnp.zeros((1, h1), jnp.float32),
        "w2": w2, "b2": b2,
        "g2": jnp.ones((1, h2), jnp.float32), "be2": jnp.zeros((1, h2), jnp.float32),
        "w3": w3, "b3": b3,
    }


def pack_params(p):
    """Build the device layout: bf16 weights zero-padded to lane-dense feature
    dims, and one packed (8, 128) f32 slab holding gamma/beta/b3 rows."""
    in_size, h1 = p["w1"].shape
    h2 = p["w2"].shape[1]
    o = p["w3"].shape[1]
    h1p, h2p, op = _pad_up(h1), _pad_up(h2), _pad_up(o)
    lmax = max(h1p, h2p, op)

    def pad2(a, rows, cols):
        return jnp.pad(a, ((0, rows - a.shape[0]), (0, cols - a.shape[1])))

    w1 = pad2(p["w1"], in_size, h1p).astype(jnp.bfloat16)
    w2 = pad2(p["w2"], h1p, h2p).astype(jnp.bfloat16)
    w3 = pad2(p["w3"], h2p, op).astype(jnp.bfloat16)

    vecs = jnp.zeros((8, lmax), jnp.float32)
    vecs = vecs.at[0, :h1].set(p["g1"][0])
    vecs = vecs.at[1, :h1].set(p["be1"][0])
    vecs = vecs.at[2, :h2].set(p["g2"][0])
    vecs = vecs.at[3, :h2].set(p["be2"][0])
    vecs = vecs.at[4, :].set(NEG)          # padded logit columns -> -1e30
    vecs = vecs.at[4, :o].set(p["b3"][0])  # real b3

    return {"w1": w1, "w2": w2, "w3": w3, "vecs": vecs}


def reference_forward(x, p):
    """Pure-JAX reference of the PyTorch forward (training-mode BN), with the
    same bf16 weight / activation quantization points as the kernel."""
    bf = jnp.bfloat16

    def bn(h, g, be):
        mu = h.mean(0, keepdims=True)
        var = ((h - mu) ** 2).mean(0, keepdims=True)
        return (h - mu) / jnp.sqrt(var + EPS) * g + be

    h = jnp.dot(x.astype(bf), p["w1"].astype(bf),
                preferred_element_type=jnp.float32) + p["b1"]
    h = jnp.maximum(bn(h, p["g1"], p["be1"]), 0.0)
    h = jnp.dot(h.astype(bf), p["w2"].astype(bf),
                preferred_element_type=jnp.float32) + p["b2"]
    h = jnp.maximum(bn(h, p["g2"], p["be2"]), 0.0)
    y = jnp.dot(h.astype(bf), p["w3"].astype(bf),
                preferred_element_type=jnp.float32) + p["b3"]
    return jax.nn.log_softmax(y, axis=1)


if __name__ == "__main__":
    batch = 8
    input_size, hidden1, hidden2, output_size = 32, 64, 32, 16

    key = jax.random.PRNGKey(0)
    kx, kp = jax.random.split(key)
    x = jax.random.normal(kx, (batch, input_size), jnp.float32)
    params = init_params(kp, input_size, hidden1, hidden2, output_size)
    dev_params = pack_params(params)

    out = mlp_two_hidden_forward(x, dev_params, output_size)
    out = jax.block_until_ready(out)

    ref = reference_forward(x, params)
    assert out.shape == (batch, output_size)
    assert bool(jnp.all(jnp.isfinite(out))), "non-finite output"
    assert jnp.allclose(out, ref, atol=1e-3, rtol=1e-3), "mismatch vs JAX reference"

    print("KERNEL_OK")
</pallas_src>

<mosaic_0001>
module attributes {stable_mosaic.version = 11 : i64} {
  func.func @mlp_two_hidden_kernel(%arg0: memref<8x32xf32, #tpu.memory_space<vmem>>, %arg1: memref<32x128xbf16, #tpu.memory_space<vmem>>, %arg2: memref<128x128xbf16, #tpu.memory_space<vmem>>, %arg3: memref<128x128xbf16, #tpu.memory_space<vmem>>, %arg4: memref<8x128xf32, #tpu.memory_space<vmem>>, %arg5: memref<8x128xf32, #tpu.memory_space<vmem>>) attributes {dimension_semantics = [], scalar_prefetch = 0 : i64, scratch_operands = 0 : i64, tpu.core_type = #tpu.core_type<tc>} {
    %c0 = arith.constant 0 : index
    %c0_0 = arith.constant 0 : index
    %0 = vector.load %arg4[%c0, %c0_0] : memref<8x128xf32, #tpu.memory_space<vmem>>, vector<8x128xf32>
    %c0_1 = arith.constant 0 : index
    %c0_2 = arith.constant 0 : index
    %1 = vector.load %arg0[%c0_1, %c0_2] : memref<8x32xf32, #tpu.memory_space<vmem>>, vector<8x32xf32>
    %2 = arith.truncf %1 : vector<8x32xf32> to vector<8x32xbf16>
    %c0_3 = arith.constant 0 : index
    %c0_4 = arith.constant 0 : index
    %3 = vector.load %arg1[%c0_3, %c0_4] : memref<32x128xbf16, #tpu.memory_space<vmem>>, vector<32x128xbf16>
    %cst = arith.constant dense<0.000000e+00> : vector<8x128xf32>
    %4 = tpu.matmul %2, %3, %cst {dimension_numbers = #tpu.dot_dimension_numbers<[1], [0], [0], [1], [0, 0, 1, 1], [], []>} : vector<8x32xbf16>, vector<32x128xbf16>, vector<8x128xf32> -> vector<8x128xf32>
    %5 = vector.extract_strided_slice %0 {offsets = [0, 0], sizes = [1, 128], strides = [1, 1]} : vector<8x128xf32> to vector<1x128xf32>
    %6 = vector.extract_strided_slice %0 {offsets = [1, 0], sizes = [1, 128], strides = [1, 1]} : vector<8x128xf32> to vector<1x128xf32>
    %cst_5 = arith.constant dense<0.000000e+00> : vector<128xf32>
    %7 = vector.multi_reduction <add>, %4, %cst_5 [0] : vector<8x128xf32> to vector<128xf32>
    %8 = vector.shape_cast %7 : vector<128xf32> to vector<1x128xf32>
    %cst_6 = arith.constant 8.000000e+00 : f32
    %9 = vector.broadcast %cst_6 : f32 to vector<1x128xf32>
    %10 = arith.divf %8, %9 : vector<1x128xf32>
    %11 = arith.mulf %4, %4 : vector<8x128xf32>
    %cst_7 = arith.constant dense<0.000000e+00> : vector<128xf32>
    %12 = vector.multi_reduction <add>, %11, %cst_7 [0] : vector<8x128xf32> to vector<128xf32>
    %13 = vector.shape_cast %12 : vector<128xf32> to vector<1x128xf32>
    %cst_8 = arith.constant 8.000000e+00 : f32
    %14 = vector.broadcast %cst_8 : f32 to vector<1x128xf32>
    %15 = arith.divf %13, %14 : vector<1x128xf32>
    %16 = arith.mulf %10, %10 : vector<1x128xf32>
    %17 = arith.subf %15, %16 : vector<1x128xf32>
    %cst_9 = arith.constant 0.000000e+00 : f32
    %18 = vector.broadcast %cst_9 : f32 to vector<1x128xf32>
    %19 = arith.maximumf %17, %18 : vector<1x128xf32>
    %20 = vector.broadcast %10 : vector<1x128xf32> to vector<8x128xf32>
    %21 = arith.subf %4, %20 : vector<8x128xf32>
    %cst_10 = arith.constant 9.99999974E-6 : f32
    %22 = vector.broadcast %cst_10 : f32 to vector<1x128xf32>
    %23 = arith.addf %19, %22 : vector<1x128xf32>
    %24 = math.rsqrt %23 : vector<1x128xf32>
    %25 = vector.broadcast %24 : vector<1x128xf32> to vector<8x128xf32>
    %26 = arith.mulf %21, %25 : vector<8x128xf32>
    %27 = vector.broadcast %5 : vector<1x128xf32> to vector<8x128xf32>
    %28 = arith.mulf %26, %27 : vector<8x128xf32>
    %29 = vector.broadcast %6 : vector<1x128xf32> to vector<8x128xf32>
    %30 = arith.addf %28, %29 : vector<8x128xf32>
    %cst_11 = arith.constant 0.000000e+00 : f32
    %31 = vector.broadcast %cst_11 : f32 to vector<8x128xf32>
    %32 = arith.maximumf %30, %31 : vector<8x128xf32>
    %33 = arith.truncf %32 : vector<8x128xf32> to vector<8x128xbf16>
    %c0_12 = arith.constant 0 : index
    %c0_13 = arith.constant 0 : index
    %34 = vector.load %arg2[%c0_12, %c0_13] : memref<128x128xbf16, #tpu.memory_space<vmem>>, vector<128x128xbf16>
    %cst_14 = arith.constant dense<0.000000e+00> : vector<8x128xf32>
    %35 = tpu.matmul %33, %34, %cst_14 {dimension_numbers = #tpu.dot_dimension_numbers<[1], [0], [0], [1], [0, 0, 1, 1], [], []>} : vector<8x128xbf16>, vector<128x128xbf16>, vector<8x128xf32> -> vector<8x128xf32>
    %36 = vector.extract_strided_slice %0 {offsets = [2, 0], sizes = [1, 128], strides = [1, 1]} : vector<8x128xf32> to vector<1x128xf32>
    %37 = vector.extract_strided_slice %0 {offsets = [3, 0], sizes = [1, 128], strides = [1, 1]} : vector<8x128xf32> to vector<1x128xf32>
    %cst_15 = arith.constant dense<0.000000e+00> : vector<128xf32>
    %38 = vector.multi_reduction <add>, %35, %cst_15 [0] : vector<8x128xf32> to vector<128xf32>
    %39 = vector.shape_cast %38 : vector<128xf32> to vector<1x128xf32>
    %cst_16 = arith.constant 8.000000e+00 : f32
    %40 = vector.broadcast %cst_16 : f32 to vector<1x128xf32>
    %41 = arith.divf %39, %40 : vector<1x128xf32>
    %42 = arith.mulf %35, %35 : vector<8x128xf32>
    %cst_17 = arith.constant dense<0.000000e+00> : vector<128xf32>
    %43 = vector.multi_reduction <add>, %42, %cst_17 [0] : vector<8x128xf32> to vector<128xf32>
    %44 = vector.shape_cast %43 : vector<128xf32> to vector<1x128xf32>
    %cst_18 = arith.constant 8.000000e+00 : f32
    %45 = vector.broadcast %cst_18 : f32 to vector<1x128xf32>
    %46 = arith.divf %44, %45 : vector<1x128xf32>
    %47 = arith.mulf %41, %41 : vector<1x128xf32>
    %48 = arith.subf %46, %47 : vector<1x128xf32>
    %cst_19 = arith.constant 0.000000e+00 : f32
    %49 = vector.broadcast %cst_19 : f32 to vector<1x128xf32>
    %50 = arith.maximumf %48, %49 : vector<1x128xf32>
    %51 = vector.broadcast %41 : vector<1x128xf32> to vector<8x128xf32>
    %52 = arith.subf %35, %51 : vector<8x128xf32>
    %cst_20 = arith.constant 9.99999974E-6 : f32
    %53 = vector.broadcast %cst_20 : f32 to vector<1x128xf32>
    %54 = arith.addf %50, %53 : vector<1x128xf32>
    %55 = math.rsqrt %54 : vector<1x128xf32>
    %56 = vector.broadcast %55 : vector<1x128xf32> to vector<8x128xf32>
    %57 = arith.mulf %52, %56 : vector<8x128xf32>
    %58 = vector.broadcast %36 : vector<1x128xf32> to vector<8x128xf32>
    %59 = arith.mulf %57, %58 : vector<8x128xf32>
    %60 = vector.broadcast %37 : vector<1x128xf32> to vector<8x128xf32>
    %61 = arith.addf %59, %60 : vector<8x128xf32>
    %cst_21 = arith.constant 0.000000e+00 : f32
    %62 = vector.broadcast %cst_21 : f32 to vector<8x128xf32>
    %63 = arith.maximumf %61, %62 : vector<8x128xf32>
    %64 = arith.truncf %63 : vector<8x128xf32> to vector<8x128xbf16>
    %c0_22 = arith.constant 0 : index
    %c0_23 = arith.constant 0 : index
    %65 = vector.load %arg3[%c0_22, %c0_23] : memref<128x128xbf16, #tpu.memory_space<vmem>>, vector<128x128xbf16>
    %cst_24 = arith.constant dense<0.000000e+00> : vector<8x128xf32>
    %66 = tpu.matmul %64, %65, %cst_24 {dimension_numbers = #tpu.dot_dimension_numbers<[1], [0], [0], [1], [0, 0, 1, 1], [], []>} : vector<8x128xbf16>, vector<128x128xbf16>, vector<8x128xf32> -> vector<8x128xf32>
    %67 = vector.extract_strided_slice %0 {offsets = [4, 0], sizes = [1, 128], strides = [1, 1]} : vector<8x128xf32> to vector<1x128xf32>
    %68 = vector.broadcast %67 : vector<1x128xf32> to vector<8x128xf32>
    %69 = arith.addf %66, %68 : vector<8x128xf32>
    %cst_25 = arith.constant dense<0xFF800000> : vector<8xf32>
    %70 = vector.multi_reduction <maximumf>, %69, %cst_25 [1] : vector<8x128xf32> to vector<8xf32>
    %71 = vector.shape_cast %70 : vector<8xf32> to vector<8x1xf32>
    %72 = vector.broadcast %71 : vector<8x1xf32> to vector<8x128xf32>
    %73 = arith.subf %69, %72 : vector<8x128xf32>
    %74 = math.exp %73 : vector<8x128xf32>
    %cst_26 = arith.constant dense<0.000000e+00> : vector<8xf32>
    %75 = vector.multi_reduction <add>, %74, %cst_26 [1] : vector<8x128xf32> to vector<8xf32>
    %76 = vector.shape_cast %75 : vector<8xf32> to vector<8x1xf32>
    %77 = math.log %76 : vector<8x1xf32>
    %78 = vector.broadcast %77 : vector<8x1xf32> to vector<8x128xf32>
    %79 = arith.subf %73, %78 : vector<8x128xf32>
    %c0_27 = arith.constant 0 : index
    %c0_28 = arith.constant 0 : index
    %80 = vector.load %arg5[%c0_27, %c0_28] : memref<8x128xf32, #tpu.memory_space<vmem>>, vector<8x128xf32>
    tpu.vector_store %arg5[%c0_27, %c0_28], %79 {strides = array<i32>} : memref<8x128xf32, #tpu.memory_space<vmem>>, vector<8x128xf32>,
    return
  }
}

</mosaic_0001>

<llo_original>
// kernel: tpu_custom_call.1
$region0: #{tpu_custom_call.1}
  #allocation0 [shape = 'u32[]', space=smem, size = 0x4, offset = 0x4, fixed_abs, tag = 'smem constant byte address 0x4 - core index']
  #allocation1 [shape = 'u32[144,128]{1,0:T(1,128)}', space=vmem, size = 0x12000, scoped, tag = 'internal scratch']
  %s0 = inlined_call_operand.hbm [shape: f32[8,32], index: 0, kind: input, shape index: {}]
  %s1 = inlined_call_operand.hbm [shape: bf16[32,128], index: 1, kind: input, shape index: {}]
  %s2 = inlined_call_operand.hbm [shape: bf16[128,128], index: 2, kind: input, shape index: {}]
  %s3 = inlined_call_operand.hbm [shape: bf16[128,128], index: 3, kind: input, shape index: {}]
  %s4 = inlined_call_operand.vmem [shape: f32[8,128], index: 4, kind: input, shape index: {}]
  %s5 = inlined_call_operand.hbm [shape: f32[8,128], index: 5, kind: output, shape index: {}]
  %s6 = sld [smem:[#allocation0]]
  $region46: #{tpu_custom_call.1} parent=0
    _
  %s8 = ssub.s32 1, %s6
  %s9 = scalar_select 0, %s8, %s6
  $region1: #{tpu_custom_call.1} parent=0
    #allocation2 [shape = 'u8[4096]{0}', space=vmem, size = 0x1000, scoped, tag = 'input window, operand 0, single buffered']
    #allocation3 [shape = 's32[1]{0}', space=sflag, size = 0x4, scoped, tag = 'scoped memory for tpu_custom_call.1']
    #allocation4 [shape = 's32[1]{0}', space=sflag, size = 0x4, scoped, tag = 'scoped memory for tpu_custom_call.1']
    #allocation5 [shape = 'u8[8192]{0}', space=vmem, size = 0x2000, scoped, tag = 'input window, operand 1, single buffered']
    #allocation6 [shape = 's32[1]{0}', space=sflag, size = 0x4, scoped, tag = 'scoped memory for tpu_custom_call.1']
    #allocation7 [shape = 'u8[32768]{0}', space=vmem, size = 0x8000, scoped, tag = 'input window, operand 2, single buffered']
    #allocation8 [shape = 'u8[32768]{0}', space=vmem, size = 0x8000, scoped, tag = 'input window, operand 3, single buffered']
    #allocation9 [shape = 's32[1]{0}', space=sflag, size = 0x4, scoped, tag = 'scoped memory for tpu_custom_call.1']
    #allocation10 [shape = 'u8[4096]{0}', space=vmem, size = 0x1000, scoped, tag = 'output window, operand 0, single buffered']
    %10 = vsyncpa [#allocation3], 0
    %11 = vsyncpa [#allocation6], 0
    %12 = vsyncpa [#allocation9], 0
    %13 = vsyncpa [#allocation4], 0
    // Predicated region
    $region2: #{tpu_custom_call.1} parent=1 // pred_check
      _
    $region3: #{tpu_custom_call.1} parent=1 // pred_check_branch
      %15 = sbr.rel (0) target = $region5
    $region4: #{tpu_custom_call.1} parent=1 // pred_region
      %s17 = ssub.s32 128, 128
      %18 = vsyncadd [#allocation3], %s17
      %s20 = sshll.u32 [#allocation2], 4
      %s21 = int_to_ptr.vmem [resolvable:$true] %s20
      %23 = dma.hbm_to_vmem [thread:$0]  %s0, 128, %s21, [#allocation3]
    $region5: #{tpu_custom_call.1} parent=1 // pred_fallthru
      _
    // Predicated region
    $region6: #{tpu_custom_call.1} parent=1 // pred_check
      _
    $region7: #{tpu_custom_call.1} parent=1 // pred_check_branch
      %25 = sbr.rel (0) target = $region9
    $region8: #{tpu_custom_call.1} parent=1 // pred_region
      %s27 = ssub.s32 256, 256
      %28 = vsyncadd [#allocation6], %s27
      %s29 = sshll.u32 [#allocation5], 4
      %s30 = int_to_ptr.vmem [resolvable:$true] %s29
      %35 = dma.hbm_to_vmem [thread:$0]  %s1, 256, %s30, [#allocation6], 64, 64, 4
    $region9: #{tpu_custom_call.1} parent=1 // pred_fallthru
      _
    // Predicated region
    $region10: #{tpu_custom_call.1} parent=1 // pred_check
      _
    $region11: #{tpu_custom_call.1} parent=1 // pred_check_branch
      %37 = sbr.rel (0) target = $region13
    $region12: #{tpu_custom_call.1} parent=1 // pred_region
      %s39 = ssub.s32 1024, 1024
      %40 = vsyncadd [#allocation6], %s39
      %s41 = sshll.u32 [#allocation7], 4
      %s42 = int_to_ptr.vmem [resolvable:$true] %s41
      %47 = dma.hbm_to_vmem [thread:$0]  %s2, 1024, %s42, [#allocation6], 64, 64, 4
    $region13: #{tpu_custom_call.1} parent=1 // pred_fallthru
      _
    // Predicated region
    $region14: #{tpu_custom_call.1} parent=1 // pred_check
      _
    $region15: #{tpu_custom_call.1} parent=1 // pred_check_branch
      %49 = sbr.rel (0) target = $region17
    $region16: #{tpu_custom_call.1} parent=1 // pred_region
      %s51 = ssub.s32 1024, 1024
      %52 = vsyncadd [#allocation9], %s51
      %s53 = sshll.u32 [#allocation8], 4
      %s54 = int_to_ptr.vmem [resolvable:$true] %s53
      %59 = dma.hbm_to_vmem [thread:$0]  %s3, 1024, %s54, [#allocation9], 64, 64, 4
    $region17: #{tpu_custom_call.1} parent=1 // pred_fallthru
      _
    // Predicated region
    $region18: #{tpu_custom_call.1} parent=1 // pred_check
      _
    $region19: #{tpu_custom_call.1} parent=1 // pred_check_branch
      %61 = sbr.rel (0) target = $region21
    $region20: #{tpu_custom_call.1} parent=1 // pred_region
      _
    $region21: #{tpu_custom_call.1} parent=1 // pred_fallthru
      _
    // Predicated region
    $region22: #{tpu_custom_call.1} parent=1 // pred_check
      _
    $region23: #{tpu_custom_call.1} parent=1 // pred_check_branch
      %63 = sbr.rel (0) target = $region25
    $region24: #{tpu_custom_call.1} parent=1 // pred_region
      %64 = dma.done [#allocation3], 128
    $region25: #{tpu_custom_call.1} parent=1 // pred_fallthru
      _
    // Predicated region
    $region26: #{tpu_custom_call.1} parent=1 // pred_check
      _
    $region27: #{tpu_custom_call.1} parent=1 // pred_check_branch
      %66 = sbr.rel (0) target = $region29
    $region28: #{tpu_custom_call.1} parent=1 // pred_region
      %67 = dma.done [#allocation6], 256
    $region29: #{tpu_custom_call.1} parent=1 // pred_fallthru
      _
    // Predicated region
    $region30: #{tpu_custom_call.1} parent=1 // pred_check
      _
    $region31: #{tpu_custom_call.1} parent=1 // pred_check_branch
      %69 = sbr.rel (0) target = $region33
    $region32: #{tpu_custom_call.1} parent=1 // pred_region
      %70 = dma.done [#allocation6], 1024
    $region33: #{tpu_custom_call.1} parent=1 // pred_fallthru
      _
    // Predicated region
    $region34: #{tpu_custom_call.1} parent=1 // pred_check
      _
    $region35: #{tpu_custom_call.1} parent=1 // pred_check_branch
      %72 = sbr.rel (0) target = $region37
    $region36: #{tpu_custom_call.1} parent=1 // pred_region
      %73 = dma.done [#allocation9], 1024
    $region37: #{tpu_custom_call.1} parent=1 // pred_fallthru
      _
    %v75 = vld [vmem:[%s4] sm:$0xff]
    %v76 = vld [vmem:[#allocation2] sm:$0xff]
    %v77 = vpack.c.bf16 %v76, %v76
    %v78 = vld [vmem:[#allocation5] sm:$0xf]
    %v79 = vld [vmem:[#allocation5 + $0x4] sm:$0xf]
    %v80 = vld [vmem:[#allocation5 + $0x8] sm:$0xf]
    %v81 = vld [vmem:[#allocation5 + $0xc] sm:$0xf]
    %v86 = vunpack.c.l.b16 %v78
    %v87 = vunpack.c.l.b16 %v79
    %v88 = vunpack.c.l.b16 %v80
    %v89 = vunpack.c.l.b16 %v81
    %v90 = vpack.c.b16 %v87, %v86
    %v91 = vpack.c.b16 %v89, %v88
    %vm94 = vcmask 261120
    %v96 = vsel %vm94, %v77, 0
    %98 = vmatprep.subr.bf16.mxu0 0
    %99 = vmatpush1.bf16.msra.mxu0 %v90
    %100 = vmatprep.subr.bf16.mxu0 0
    %101 = vmatpush1.bf16.msra.mxu0 %v91
    %102 = vmatprep.subr.bf16.mxu0 0
    %103 = vmatpush1.bf16.msra.mxu0 0
    %104 = vmatprep.subr.bf16.mxu0 0
    %105 = vmatpush1.bf16.msra.mxu0 0
    %106 = vmatprep.subr.bf16.mxu0 0
    %107 = vmatpush1.bf16.msra.mxu0 0
    %108 = vmatprep.subr.bf16.mxu0 0
    %109 = vmatpush1.bf16.msra.mxu0 0
    %110 = vmatprep.subr.bf16.mxu0 0
    %111 = vmatpush1.bf16.msra.mxu0 0
    %112 = vmatprep.subr.bf16.mxu0 0
    %113 = vmatpush1.bf16.msra.mxu0 0
    %114 = vmatprep.subr.bf16.mxu0 0
    %115 = vmatpush1.bf16.msra.mxu0 0
    %116 = vmatprep.subr.bf16.mxu0 0
    %117 = vmatpush1.bf16.msra.mxu0 0
    %118 = vmatprep.subr.bf16.mxu0 0
    %119 = vmatpush1.bf16.msra.mxu0 0
    %120 = vmatprep.subr.bf16.mxu0 0
    %121 = vmatpush1.bf16.msra.mxu0 0
    %122 = vmatprep.subr.bf16.mxu0 0
    %123 = vmatpush1.bf16.msra.mxu0 0
    %124 = vmatprep.subr.bf16.mxu0 0
    %125 = vmatpush1.bf16.msra.mxu0 0
    %126 = vmatprep.subr.bf16.mxu0 0
    %127 = vmatpush1.bf16.msra.mxu0 0
    %128 = vmatprep.subr.bf16.mxu0 0
    %129 = vmatpush1.bf16.msra.mxu0 0
    %130 = vmatprep.mubr.bf16.mxu0 0
    %131 = vmatmul.mubr.bf16.gmra.mrb[0].mxu0 %v96
    %v132 = vpop.f32.mrb[0].mxu0
    %v133 = vadd.f32 0.0, %v132
    %v134 = vpop.f32.mrb[0].mxu0
    %v135 = vpop.f32.mrb[0].mxu0
    %v136 = vpop.f32.mrb[0].mxu0
    %137 = vdwg.mxu0
    %v138 = vrot.slane %v133, 4
    %v139 = vadd.f32 %v133, %v138
    %v140 = vrot.slane %v139, 2
    %v141 = vadd.f32 %v139, %v140
    %v142 = vrot.slane %v141, 1
    %v143 = vadd.f32 %v141, %v142
    %v144 = vrcp.pop 8.0
    %v145 = vmul.f32 %v143, %v144
    %v146 = vmul.f32 %v133, %v133
    %v147 = vrot.slane %v146, 4
    %v148 = vadd.f32 %v146, %v147
    %v149 = vrot.slane %v148, 2
    %v150 = vadd.f32 %v148, %v149
    %v151 = vrot.slane %v150, 1
    %v152 = vadd.f32 %v150, %v151
    %v153 = vmul.f32 %v152, %v144
    %v154 = vmul.f32 %v145, %v145
    %v155 = vsub.f32 %v153, %v154
    %v156 = vmax.f32 %v155, 0.0
    %v157 = vsub.f32 %v133, %v145
    %v158 = vadd.f32 %v156, 1e-05
    %v159 = vrsqrt.pop %v158
    %v160 = vmul.f32 %v157, %v159
    %v161 = vlaneseq
    %v162 = vshrl.u32 %v161, 7
    %v163 = vsub.s32 0, %v162
    %v164 = vrot.slane %v75, %v163
    %v165 = vmul.f32 %v160, %v164
    %v166 = vlaneseq
    %v167 = vshrl.u32 %v166, 7
    %v168 = vsub.s32 1, %v167
    %v169 = vrot.slane %v75, %v168
    %v170 = vadd.f32 %v165, %v169
    %v171 = vmax.f32 %v170, 0.0
    %v172 = vpack.c.bf16 %v171, %v171
    %v173 = vld [vmem:[#allocation7] sm:$0xf]
    %v174 = vld [vmem:[#allocation7 + $0x4] sm:$0xf]
    %v175 = vld [vmem:[#allocation7 + $0x8] sm:$0xf]
    %v176 = vld [vmem:[#allocation7 + $0xc] sm:$0xf]
    %v177 = vld [vmem:[#allocation7 + $0x10] sm:$0xf]
    %v178 = vld [vmem:[#allocation7 + $0x14] sm:$0xf]
    %v179 = vld [vmem:[#allocation7 + $0x18] sm:$0xf]
    %v180 = vld [vmem:[#allocation7 + $0x1c] sm:$0xf]
    %v181 = vld [vmem:[#allocation7 + $0x20] sm:$0xf]
    %v182 = vld [vmem:[#allocation7 + $0x24] sm:$0xf]
    %v183 = vld [vmem:[#allocation7 + $0x28] sm:$0xf]
    %v184 = vld [vmem:[#allocation7 + $0x2c] sm:$0xf]
    %v185 = vld [vmem:[#allocation7 + $0x30] sm:$0xf]
    %v186 = vld [vmem:[#allocation7 + $0x34] sm:$0xf]
    %v187 = vld [vmem:[#allocation7 + $0x38] sm:$0xf]
    %v188 = vld [vmem:[#allocation7 + $0x3c] sm:$0xf]
    %v205 = vunpack.c.l.b16 %v173
    %v206 = vunpack.c.l.b16 %v174
    %v207 = vunpack.c.l.b16 %v175
    %v208 = vunpack.c.l.b16 %v176
    %v209 = vunpack.c.l.b16 %v177
    %v210 = vunpack.c.l.b16 %v178
    %v211 = vunpack.c.l.b16 %v179
    %v212 = vunpack.c.l.b16 %v180
    %v213 = vunpack.c.l.b16 %v181
    %v214 = vunpack.c.l.b16 %v182
    %v215 = vunpack.c.l.b16 %v183
    %v216 = vunpack.c.l.b16 %v184
    %v217 = vunpack.c.l.b16 %v185
    %v218 = vunpack.c.l.b16 %v186
    %v219 = vunpack.c.l.b16 %v187
    %v220 = vunpack.c.l.b16 %v188
    %v221 = vpack.c.b16 %v206, %v205
    %v222 = vpack.c.b16 %v208, %v207
    %v223 = vpack.c.b16 %v210, %v209
    %v224 = vpack.c.b16 %v212, %v211
    %v225 = vpack.c.b16 %v214, %v213
    %v226 = vpack.c.b16 %v216, %v215
    %v227 = vpack.c.b16 %v218, %v217
    %v228 = vpack.c.b16 %v220, %v219
    %237 = vmatprep.subr.bf16.mxu0 0
    %238 = vmatpush1.bf16.msra.mxu0 %v221
    %239 = vmatprep.subr.bf16.mxu0 0
    %240 = vmatpush1.bf16.msra.mxu0 %v222
    %241 = vmatprep.subr.bf16.mxu0 0
    %242 = vmatpush1.bf16.msra.mxu0 %v223
    %243 = vmatprep.subr.bf16.mxu0 0
    %244 = vmatpush1.bf16.msra.mxu0 %v224
    %245 = vmatprep.subr.bf16.mxu0 0
    %246 = vmatpush1.bf16.msra.mxu0 %v225
    %247 = vmatprep.subr.bf16.mxu0 0
    %248 = vmatpush1.bf16.msra.mxu0 %v226
    %249 = vmatprep.subr.bf16.mxu0 0
    %250 = vmatpush1.bf16.msra.mxu0 %v227
    %251 = vmatprep.subr.bf16.mxu0 0
    %252 = vmatpush1.bf16.msra.mxu0 %v228
    %253 = vmatprep.subr.bf16.mxu0 0
    %254 = vmatpush1.bf16.msra.mxu0 0
    %255 = vmatprep.subr.bf16.mxu0 0
    %256 = vmatpush1.bf16.msra.mxu0 0
    %257 = vmatprep.subr.bf16.mxu0 0
    %258 = vmatpush1.bf16.msra.mxu0 0
    %259 = vmatprep.subr.bf16.mxu0 0
    %260 = vmatpush1.bf16.msra.mxu0 0
    %261 = vmatprep.subr.bf16.mxu0 0
    %262 = vmatpush1.bf16.msra.mxu0 0
    %263 = vmatprep.subr.bf16.mxu0 0
    %264 = vmatpush1.bf16.msra.mxu0 0
    %265 = vmatprep.subr.bf16.mxu0 0
    %266 = vmatpush1.bf16.msra.mxu0 0
    %267 = vmatprep.subr.bf16.mxu0 0
    %268 = vmatpush1.bf16.msra.mxu0 0
    %269 = vmatprep.mubr.bf16.mxu0 0
    %270 = vmatmul.mubr.bf16.gmra.mrb[0].mxu0 %v172
    %v271 = vpop.f32.mrb[0].mxu0
    %v272 = vadd.f32 0.0, %v271
    %v273 = vpop.f32.mrb[0].mxu0
    %v274 = vpop.f32.mrb[0].mxu0
    %v275 = vpop.f32.mrb[0].mxu0
    %276 = vdwg.mxu0
    %v277 = vrot.slane %v272, 4
    %v278 = vadd.f32 %v272, %v277
    %v279 = vrot.slane %v278, 2
    %v280 = vadd.f32 %v278, %v279
    %v281 = vrot.slane %v280, 1
    %v282 = vadd.f32 %v280, %v281
    %v283 = vmul.f32 %v282, %v144
    %v284 = vmul.f32 %v272, %v272
    %v285 = vrot.slane %v284, 4
    %v286 = vadd.f32 %v284, %v285
    %v287 = vrot.slane %v286, 2
    %v288 = vadd.f32 %v286, %v287
    %v289 = vrot.slane %v288, 1
    %v290 = vadd.f32 %v288, %v289
    %v291 = vmul.f32 %v290, %v144
    %v292 = vmul.f32 %v283, %v283
    %v293 = vsub.f32 %v291, %v292
    %v294 = vmax.f32 %v293, 0.0
    %v295 = vsub.f32 %v272, %v283
    %v296 = vadd.f32 %v294, 1e-05
    %v297 = vrsqrt.pop %v296
    %v298 = vmul.f32 %v295, %v297
    %v299 = vlaneseq
    %v300 = vshrl.u32 %v299, 7
    %v301 = vsub.s32 2, %v300
    %v302 = vrot.slane %v75, %v301
    %v303 = vmul.f32 %v298, %v302
    %v304 = vlaneseq
    %v305 = vshrl.u32 %v304, 7
    %v306 = vsub.s32 3, %v305
    %v307 = vrot.slane %v75, %v306
    %v308 = vadd.f32 %v303, %v307
    %v309 = vmax.f32 %v308, 0.0
    %v310 = vpack.c.bf16 %v309, %v309
    %v311 = vld [vmem:[#allocation8] sm:$0xf]
    %v312 = vld [vmem:[#allocation8 + $0x4] sm:$0xf]
    %v313 = vld [vmem:[#allocation8 + $0x8] sm:$0xf]
    %v314 = vld [vmem:[#allocation8 + $0xc] sm:$0xf]
    %v315 = vld [vmem:[#allocation8 + $0x10] sm:$0xf]
    %v316 = vld [vmem:[#allocation8 + $0x14] sm:$0xf]
    %v317 = vld [vmem:[#allocation8 + $0x18] sm:$0xf]
    %v318 = vld [vmem:[#allocation8 + $0x1c] sm:$0xf]
    %v319 = vld [vmem:[#allocation8 + $0x20] sm:$0xf]
    %v320 = vld [vmem:[#allocation8 + $0x24] sm:$0xf]
    %v321 = vld [vmem:[#allocation8 + $0x28] sm:$0xf]
    %v322 = vld [vmem:[#allocation8 + $0x2c] sm:$0xf]
    %v323 = vld [vmem:[#allocation8 + $0x30] sm:$0xf]
    %v324 = vld [vmem:[#allocation8 + $0x34] sm:$0xf]
    %v325 = vld [vmem:[#allocation8 + $0x38] sm:$0xf]
    %v326 = vld [vmem:[#allocation8 + $0x3c] sm:$0xf]
    %v327 = vlaneseq
    %v328 = vshrl.u32 %v327, 7
    %v329 = vsub.s32 4, %v328
    %v330 = vrot.slane %v75, %v329
    %v347 = vunpack.c.l.b16 %v311
    %v348 = vunpack.c.l.b16 %v312
    %v349 = vunpack.c.l.b16 %v313
    %v350 = vunpack.c.l.b16 %v314
    %v351 = vunpack.c.l.b16 %v315
    %v352 = vunpack.c.l.b16 %v316
    %v353 = vunpack.c.l.b16 %v317
    %v354 = vunpack.c.l.b16 %v318
    %v355 = vunpack.c.l.b16 %v319
    %v356 = vunpack.c.l.b16 %v320
    %v357 = vunpack.c.l.b16 %v321
    %v358 = vunpack.c.l.b16 %v322
    %v359 = vunpack.c.l.b16 %v323
    %v360 = vunpack.c.l.b16 %v324
    %v361 = vunpack.c.l.b16 %v325
    %v362 = vunpack.c.l.b16 %v326
    %v363 = vpack.c.b16 %v348, %v347
    %v364 = vpack.c.b16 %v350, %v349
    %v365 = vpack.c.b16 %v352, %v351
    %v366 = vpack.c.b16 %v354, %v353
    %v367 = vpack.c.b16 %v356, %v355
    %v368 = vpack.c.b16 %v358, %v357
    %v369 = vpack.c.b16 %v360, %v359
    %v370 = vpack.c.b16 %v362, %v361
    %379 = vmatprep.subr.bf16.mxu0 0
    %380 = vmatpush1.bf16.msra.mxu0 %v363
    %381 = vmatprep.subr.bf16.mxu0 0
    %382 = vmatpush1.bf16.msra.mxu0 %v364
    %383 = vmatprep.subr.bf16.mxu0 0
    %384 = vmatpush1.bf16.msra.mxu0 %v365
    %385 = vmatprep.subr.bf16.mxu0 0
    %386 = vmatpush1.bf16.msra.mxu0 %v366
    %387 = vmatprep.subr.bf16.mxu0 0
    %388 = vmatpush1.bf16.msra.mxu0 %v367
    %389 = vmatprep.subr.bf16.mxu0 0
    %390 = vmatpush1.bf16.msra.mxu0 %v368
    %391 = vmatprep.subr.bf16.mxu0 0
    %392 = vmatpush1.bf16.msra.mxu0 %v369
    %393 = vmatprep.subr.bf16.mxu0 0
    %394 = vmatpush1.bf16.msra.mxu0 %v370
    %395 = vmatprep.subr.bf16.mxu0 0
    %396 = vmatpush1.bf16.msra.mxu0 0
    %397 = vmatprep.subr.bf16.mxu0 0
    %398 = vmatpush1.bf16.msra.mxu0 0
    %399 = vmatprep.subr.bf16.mxu0 0
    %400 = vmatpush1.bf16.msra.mxu0 0
    %401 = vmatprep.subr.bf16.mxu0 0
    %402 = vmatpush1.bf16.msra.mxu0 0
    %403 = vmatprep.subr.bf16.mxu0 0
    %404 = vmatpush1.bf16.msra.mxu0 0
    %405 = vmatprep.subr.bf16.mxu0 0
    %406 = vmatpush1.bf16.msra.mxu0 0
    %407 = vmatprep.subr.bf16.mxu0 0
    %408 = vmatpush1.bf16.msra.mxu0 0
    %409 = vmatprep.subr.bf16.mxu0 0
    %410 = vmatpush1.bf16.msra.mxu0 0
    %411 = vmatprep.mubr.bf16.mxu0 0
    %412 = vmatmul.mubr.bf16.gmra.mrb[0].mxu0 %v310
    %v413 = vpop.f32.mrb[0].mxu0
    %v414 = vadd.f32 %v330, %v413
    %v415 = vpop.f32.mrb[0].mxu0
    %v416 = vpop.f32.mrb[0].mxu0
    %v417 = vpop.f32.mrb[0].mxu0
    %418 = vdwg.mxu0
    %419 = vmax.xlane.f32.xlu0 %v414
    %v420 = vpop.xlane.xlu0 %419
    %v421 = vsub.f32 %v414, %v420
    %v422 = vmul.f32 %v421, 1.442695
    %v423 = vpow.pop %v422
    %424 = vadd.xlane.f32.xlu0 %v423
    %v425 = vpop.xlane.xlu0 %424
    %v426 = vlog2.pop %v425
    %v427 = vmul.f32 %v426, 0.6931472
    %v428 = vsub.f32 %v421, %v427
    %429 = vst [vmem:[#allocation10] sm:$0xff] %v428
    // Predicated region
    $region38: #{tpu_custom_call.1} parent=1 // pred_check
      _
    $region39: #{tpu_custom_call.1} parent=1 // pred_check_branch
      %431 = sbr.rel (0) target = $region41
    $region40: #{tpu_custom_call.1} parent=1 // pred_region
      %s433 = ssub.s32 128, 128
      %434 = vsyncadd [#allocation4], %s433
      %s436 = sshll.u32 [#allocation10], 4
      %s437 = int_to_ptr.vmem [resolvable:$true] %s436
      %439 = dma.vmem_to_hbm [thread:$0]  %s437, 128, %s5, [#allocation4]
    $region41: #{tpu_custom_call.1} parent=1 // pred_fallthru
      _
    // Predicated region
    $region42: #{tpu_custom_call.1} parent=1 // pred_check
      _
    $region43: #{tpu_custom_call.1} parent=1 // pred_check_branch
      %441 = sbr.rel (0) target = $region45
    $region44: #{tpu_custom_call.1} parent=1 // pred_region
      %442 = dma.done [#allocation4], 128
    $region45: #{tpu_custom_call.1} parent=1 // pred_fallthru
      _
    %443 = vsyncpa [#allocation3], 1
    %444 = vsyncpa [#allocation6], 1
    %445 = vsyncpa [#allocation9], 1
    %446 = vsyncpa [#allocation4], 1

</llo_original>
